<compile_context>
chip_gen: v5e
topology: v5e:2x2
jax: 0.10.0
libtpu: 0.0.40
codegen_flags: <defaults>
</compile_context>

<pallas_src>
import numpy as np
import jax
import jax.numpy as jnp
from jax.experimental import pallas as pl
from jax.experimental.pallas import tpu as pltpu

K = 5
SIGMA = 0.02
_BLOCK_TN = 128          # output-column tile width for the block-banded path


# ---------------------------------------------------------------------------
# Host-side tap / band-matrix construction (mirrors GaussianKernelConv.kernel)
# ---------------------------------------------------------------------------

def _gauss_taps(n: int, k: int = K, sigma: float = SIGMA) -> np.ndarray:
    w = np.exp(-((np.arange(-k, k + 1, dtype=np.float64) / n / sigma) ** 2) / 2.0)
    return (w / w.sum()).astype(np.float32)


def _band_matrix(n: int, k: int = K, sigma: float = SIGMA) -> np.ndarray:
    """(N, N) band matrix W with W[j, i] = taps[j - i + k] for |j - i| <= k,
    so (x @ W)[:, i] == 'same'-padded conv1d(x, taps)[:, i]."""
    taps = _gauss_taps(n, k, sigma)
    idx = np.arange(n)
    d = idx[:, None] - idx[None, :]
    mask = np.abs(d) <= k
    W = np.zeros((n, n), np.float32)
    W[mask] = taps[d[mask] + k]
    return W


def _block_band_slabs(n: int, k: int, sigma: float, tn: int):
    """Per-column-tile band slabs for the large-N path.

    For output tile j (columns [j*tn, (j+1)*tn)) the kernel computes
        out[:, j*tn + c] = sum_r x[:, start_j + r] * W_j[r, c]
    with W_j[r, c] = taps[(start_j + r) - (j*tn + c) + k] inside the band and
    0 outside ('same' zero padding falls out of the zero entries / omitted
    rows).  Only the first / middle / last tiles give distinct slabs, so the
    slabs are deduplicated (<= 3 unique, ~216 KiB at tn=128)."""
    taps = _gauss_taps(n, k, sigma)
    width = tn + 2 * k
    width += (-width) % 8            # pad rows to a sublane multiple
    num_tiles = n // tn
    slabs, starts, slab_idx = [], [], []
    for j in range(num_tiles):
        start = min(max(j * tn - k, 0), n - width)
        r = np.arange(width)[:, None] + start
        c = np.arange(tn)[None, :] + j * tn
        d = r - c
        mask = np.abs(d) <= k
        W = np.zeros((width, tn), np.float32)
        W[mask] = taps[d[mask] + k]
        found = None
        for si, ex in enumerate(slabs):
            if np.array_equal(ex, W):
                found = si
                break
        if found is None:
            slabs.append(W)
            found = len(slabs) - 1
        starts.append(start)
        slab_idx.append(found)
    return np.stack(slabs), tuple(starts), tuple(slab_idx), width


# ---------------------------------------------------------------------------
# Kernels
# ---------------------------------------------------------------------------

def _normalize_and_store(acc, out_ref):
    # F.normalize(p=1, dim=-1): one exact divide per row + broadcast multiply
    # (removes ~N-1 per-element divides per row vs. acc / l1; ~1 ulp diff).
    l1 = jnp.maximum(jnp.sum(jnp.abs(acc), axis=-1, keepdims=True), 1e-12)
    out_ref[...] = (acc * (1.0 / l1)).astype(out_ref.dtype)


def _matmul_kernel(x_ref, w_ref, out_ref):
    # Small N: one (TB, N) x (N, N) banded matmul on the MXU.  HIGHEST keeps
    # true-f32 accuracy (default TPU precision truncates inputs to bf16).
    acc = jnp.dot(x_ref[...].astype(jnp.float32), w_ref[...],
                  preferred_element_type=jnp.float32,
                  precision=jax.lax.Precision.HIGHEST)
    _normalize_and_store(acc, out_ref)


def _make_block_band_kernel(n, tn, width, starts, slab_idx):
    """Large N (multiple of 128): column-tiled band matmul.  MXU work per
    element is 2*(tn+2k) FLOPs independent of N, so the kernel stays
    HBM-bound on v5e/v6e/v7x."""
    num_tiles = n // tn

    def kernel(x_ref, w_ref, out_ref):
        parts = []
        l1 = None
        for j in range(num_tiles):
            xs = x_ref[:, starts[j]:starts[j] + width].astype(jnp.float32)
            pj = jnp.dot(xs, w_ref[slab_idx[j]],
                         preferred_element_type=jnp.float32,
                         precision=jax.lax.Precision.HIGHEST)
            parts.append(pj)
            s = jnp.sum(jnp.abs(pj), axis=-1, keepdims=True)
            l1 = s if l1 is None else l1 + s
        inv = 1.0 / jnp.maximum(l1, 1e-12)   # one divide per row
        for j in range(num_tiles):
            out_ref[:, j * tn:(j + 1) * tn] = (parts[j] * inv).astype(out_ref.dtype)

    return kernel


def _make_shift_kernel(taps, n, k):
    """Fallback for large N that is not a multiple of 128: static shifted
    slices (zero-filled at the edges) times scalar taps — no per-tap masks."""
    taps = [float(t) for t in taps]

    def kernel(x_ref, out_ref):
        x = x_ref[...].astype(jnp.float32)
        rows = x.shape[0]
        acc = taps[k] * x
        for t in range(2 * k + 1):
            s = t - k
            if s == 0:
                continue
            if s > 0:
                shifted = jnp.concatenate(
                    [x[:, s:], jnp.zeros((rows, s), jnp.float32)], axis=-1)
            else:
                shifted = jnp.concatenate(
                    [jnp.zeros((rows, -s), jnp.float32), x[:, :n + s]], axis=-1)
            acc = acc + taps[t] * shifted
        _normalize_and_store(acc, out_ref)

    return kernel


# ---------------------------------------------------------------------------
# Tiling / chip configuration
# ---------------------------------------------------------------------------

def _chip_config():
    """Generation-gated knobs (VMEM budget, vmem limit, dense-matmul cutoff).
    Falls back to v7x-safe numbers if the hardware query fails."""
    vmem_cap = None
    kind = ""
    try:
        vmem_cap = int(pltpu.get_tpu_info().vmem_capacity_bytes)
    except Exception:
        pass
    try:
        kind = jax.devices()[0].device_kind.lower()
    except Exception:
        pass
    if vmem_cap is None:
        vmem_cap = 64 << 20                      # assume v7x (smallest VMEM)
    big_vmem = vmem_cap >= (100 << 20)           # v5e / v6e: 128 MiB VMEM
    tile_budget = (40 << 20) if big_vmem else (16 << 20)
    vmem_limit = (96 << 20) if big_vmem else (48 << 20)
    if "v5" in kind:
        matmul_max = 128      # dense NxN band matmul goes MXU-bound early on v5e
    elif "v6" in kind:
        matmul_max = 384
    else:
        matmul_max = 256      # v7x / unknown: f32-HIGHEST cutoff
    return tile_budget, vmem_limit, matmul_max


def _choose_batch_tile(b: int, n: int, tile_budget: int) -> int:
    """~4 MiB blocks (above the ~2 MiB HBM-roofline knee), capped by the
    per-tile VMEM budget, and split into >= 4 grid steps (>= 2 per TensorCore
    on v7x) whenever that still leaves >= 2 MiB blocks."""
    bytes_per_row = 4 * n
    rows_vmem = max(8, (tile_budget // (6 * bytes_per_row)) // 8 * 8)
    rows_tgt = max(8, ((4 << 20) // bytes_per_row) // 8 * 8)
    rows = min(rows_vmem, rows_tgt)
    min_steps = 4
    if b * bytes_per_row >= min_steps * (2 << 20):
        rows = min(rows, max(8, (b // min_steps) // 8 * 8))
    return min(rows, max(8, -(-b // 8) * 8))


# ---------------------------------------------------------------------------
# Public wrapper
# ---------------------------------------------------------------------------

def gaussian_kernel_conv(target: jax.Array, k: int = K, sigma: float = SIGMA,
                         path: str | None = None) -> jax.Array:
    """target: (B, N) -> (B, N) L1-normalized Gaussian-smoothed weights."""
    B, N = target.shape
    tile_budget, vmem_limit, matmul_max = _chip_config()
    tb = _choose_batch_tile(B, N, tile_budget)
    grid = (pl.cdiv(B, tb),)
    cparams = pltpu.CompilerParams(
        dimension_semantics=("parallel",),     # batch tiles are independent
        vmem_limit_bytes=vmem_limit,
    )
    x_spec = pl.BlockSpec((tb, N), lambda i: (i, 0))
    o_spec = pl.BlockSpec((tb, N), lambda i: (i, 0))
    # TODO(synk): for N < 128 / N not a multiple of 128 the output could be
    # repacked into a lane-dense slab to avoid masked partial stores.

    if path is None:
        if N % _BLOCK_TN == 0 and N >= 2 * _BLOCK_TN:
            path = "block"
        elif N <= matmul_max:
            path = "matmul"
        else:
            path = "shift"

    if path == "matmul":
        W = jnp.asarray(_band_matrix(N, k, sigma))
        # W's block index never changes, so the pipeline only fetches it once.
        # (pipeline_mode=pl.Buffered(1) would also drop its second VMEM buffer,
        #  but W is small here so the default double buffer is kept for safety.)
        return pl.pallas_call(
            _matmul_kernel,
            out_shape=jax.ShapeDtypeStruct((B, N), target.dtype),
            grid=grid,
            in_specs=[x_spec, pl.BlockSpec((N, N), lambda i: (0, 0))],
            out_specs=o_spec,
            compiler_params=cparams,
        )(target, W)

    if path == "block":
        slabs, starts, slab_idx, width = _block_band_slabs(N, k, sigma, _BLOCK_TN)
        kern = _make_block_band_kernel(N, _BLOCK_TN, width, starts, slab_idx)
        ns = slabs.shape[0]
        return pl.pallas_call(
            kern,
            out_shape=jax.ShapeDtypeStruct((B, N), target.dtype),
            grid=grid,
            in_specs=[x_spec,
                      pl.BlockSpec((ns, width, _BLOCK_TN), lambda i: (0, 0, 0))],
            out_specs=o_spec,
            compiler_params=cparams,
        )(target, jnp.asarray(slabs))

    kern = _make_shift_kernel(_gauss_taps(N, k, sigma), N, k)
    return pl.pallas_call(
        kern,
        out_shape=jax.ShapeDtypeStruct((B, N), target.dtype),
        grid=grid,
        in_specs=[x_spec],
        out_specs=o_spec,
        compiler_params=cparams,
    )(target)


# ---------------------------------------------------------------------------
# Pure-JAX reference of the PyTorch forward (for verification)
# ---------------------------------------------------------------------------

def _reference(target: jax.Array, k: int = K, sigma: float = SIGMA) -> jax.Array:
    B, N = target.shape
    taps = jnp.asarray(_gauss_taps(N, k, sigma), jnp.float32)
    xpad = jnp.pad(target.astype(jnp.float32), ((0, 0), (k, k)))
    out = jnp.zeros((B, N), jnp.float32)
    for t in range(2 * k + 1):
        out = out + taps[t] * xpad[:, t:t + N]
    l1 = jnp.maximum(jnp.sum(jnp.abs(out), axis=-1, keepdims=True), 1e-12)
    return (out / l1).astype(target.dtype)


if __name__ == "__main__":
    root = jax.random.PRNGKey(0)
    k1, k2, k3 = jax.random.split(root, 3)

    # Path "matmul": small N -> dense banded MXU matmul.
    x1 = jax.random.normal(k1, (4, 128), dtype=jnp.float32)
    o1 = jax.block_until_ready(gaussian_kernel_conv(x1))
    assert o1.shape == x1.shape
    assert jnp.allclose(o1, _reference(x1), atol=1e-5, rtol=1e-5), "matmul path mismatch"

    # Path "block": large N (multiple of 128) -> column-tiled band matmul.
    x2 = jax.random.normal(k2, (8, 640), dtype=jnp.float32)
    o2 = jax.block_until_ready(gaussian_kernel_conv(x2))
    assert jnp.allclose(o2, _reference(x2), atol=1e-5, rtol=1e-5), "block path mismatch"

    # Path "shift": fallback for N not a multiple of 128 (forced here).
    x3 = jax.random.normal(k3, (8, 200), dtype=jnp.float32)
    o3 = jax.block_until_ready(gaussian_kernel_conv(x3, path="shift"))
    assert jnp.allclose(o3, _reference(x3), atol=1e-5, rtol=1e-5), "shift path mismatch"

    print("KERNEL_OK")
</pallas_src>

<mosaic_0001>
module attributes {stable_mosaic.version = 11 : i64} {
  func.func @_matmul_kernel(%arg0: i32, %arg1: memref<8x128xf32, #tpu.memory_space<vmem>>, %arg2: memref<128x128xf32, #tpu.memory_space<vmem>>, %arg3: memref<8x128xf32, #tpu.memory_space<vmem>>) attributes {dimension_semantics = [#tpu.dimension_semantics<parallel>], iteration_bounds = array<i64: 1>, scalar_prefetch = 0 : i64, scratch_operands = 0 : i64, tpu.core_type = #tpu.core_type<tc>, window_params = [{transform_indices = @transform_0, window_bounds = array<i64: 8, 128>}, {pipeline_mode = #tpu.pipeline_mode<synchronous>, transform_indices = @transform_1, window_bounds = array<i64: 128, 128>}, {transform_indices = @transform_2, window_bounds = array<i64: 8, 128>}]} {
    %c0 = arith.constant 0 : index
    %c0_0 = arith.constant 0 : index
    %0 = vector.load %arg1[%c0, %c0_0] : memref<8x128xf32, #tpu.memory_space<vmem>>, vector<8x128xf32>
    %c0_1 = arith.constant 0 : index
    %c0_2 = arith.constant 0 : index
    %1 = vector.load %arg2[%c0_1, %c0_2] : memref<128x128xf32, #tpu.memory_space<vmem>>, vector<128x128xf32>
    %cst = arith.constant dense<0.000000e+00> : vector<8x128xf32>
    %2 = tpu.matmul %0, %1, %cst {dimension_numbers = #tpu.dot_dimension_numbers<[1], [0], [0], [1], [0, 0, 1, 1], [], []>, precision = #tpu.contract_precision<fp32>} : vector<8x128xf32>, vector<128x128xf32>, vector<8x128xf32> -> vector<8x128xf32>
    %3 = math.absf %2 : vector<8x128xf32>
    %cst_3 = arith.constant dense<0.000000e+00> : vector<8xf32>
    %4 = vector.multi_reduction <add>, %3, %cst_3 [1] : vector<8x128xf32> to vector<8xf32>
    %5 = vector.shape_cast %4 : vector<8xf32> to vector<8x1xf32>
    %cst_4 = arith.constant 9.99999996E-13 : f32
    %6 = vector.broadcast %cst_4 : f32 to vector<8x1xf32>
    %7 = arith.maximumf %5, %6 : vector<8x1xf32>
    %cst_5 = arith.constant 1.000000e+00 : f32
    %8 = vector.broadcast %cst_5 : f32 to vector<8x1xf32>
    %9 = arith.divf %8, %7 : vector<8x1xf32>
    %10 = vector.broadcast %9 : vector<8x1xf32> to vector<8x128xf32>
    %11 = arith.mulf %2, %10 : vector<8x128xf32>
    %c0_6 = arith.constant 0 : index
    %c0_7 = arith.constant 0 : index
    %12 = vector.load %arg3[%c0_6, %c0_7] : memref<8x128xf32, #tpu.memory_space<vmem>>, vector<8x128xf32>
    tpu.vector_store %arg3[%c0_6, %c0_7], %11 {strides = array<i32>} : memref<8x128xf32, #tpu.memory_space<vmem>>, vector<8x128xf32>,
    return
  }
  func.func @transform_0(%arg0: i32) -> (i32, i32) {
    %c0_i32 = arith.constant 0 : i32
    %c0_i32_0 = arith.constant 0 : i32
    return %arg0, %c0_i32 : i32, i32
  }
  func.func @transform_1(%arg0: i32) -> (i32, i32) {
    %c0_i32 = arith.constant 0 : i32
    %c0_i32_0 = arith.constant 0 : i32
    %c0_i32_1 = arith.constant 0 : i32
    return %c0_i32, %c0_i32_0 : i32, i32
  }
  func.func @transform_2(%arg0: i32) -> (i32, i32) {
    %c0_i32 = arith.constant 0 : i32
    %c0_i32_0 = arith.constant 0 : i32
    return %arg0, %c0_i32 : i32, i32
  }
}

</mosaic_0001>

<llo_original>
// kernel: tpu_custom_call.1
$region0: #{tpu_custom_call.1}
  #allocation0 [shape = 'u32[]', space=smem, size = 0x4, offset = 0x4, fixed_abs, tag = 'smem constant byte address 0x4 - core index']
  #allocation1 [shape = 'u32[72,128]{1,0:T(1,128)}', space=vmem, size = 0x9000, scoped, tag = 'internal scratch']
  %s0 = inlined_call_operand.hbm [shape: f32[4,128], index: 0, kind: input, shape index: {}]
  %s1 = inlined_call_operand.hbm [shape: f32[128,128], index: 1, kind: input, shape index: {}]
  %s2 = inlined_call_operand.hbm [shape: f32[4,128], index: 2, kind: output, shape index: {}]
  %s3 = sld [smem:[#allocation0]]
  $region26: #{tpu_custom_call.1} parent=0
    _
  %s5 = ssub.s32 1, %s3
  %s6 = scalar_select 0, %s5, %s3
  $region1: #{tpu_custom_call.1} parent=0
    #allocation2 [shape = 'u8[4096]{0}', space=vmem, size = 0x1000, scoped, tag = 'input window, operand 0, single buffered']
    #allocation3 [shape = 's32[1]{0}', space=sflag, size = 0x4, scoped, tag = 'scoped memory for tpu_custom_call.1']
    #allocation4 [shape = 's32[1]{0}', space=sflag, size = 0x4, scoped, tag = 'scoped memory for tpu_custom_call.1']
    #allocation5 [shape = 'u8[65536]{0}', space=vmem, size = 0x10000, scoped, tag = 'input window, operand 1, single buffered']
    #allocation6 [shape = 's32[1]{0}', space=sflag, size = 0x4, scoped, tag = 'scoped memory for tpu_custom_call.1']
    #allocation7 [shape = 'u8[4096]{0}', space=vmem, size = 0x1000, scoped, tag = 'output window, operand 0, single buffered']
    %7 = vsyncpa [#allocation3], 0
    %8 = vsyncpa [#allocation6], 0
    %9 = vsyncpa [#allocation4], 0
    // Predicated region
    $region2: #{tpu_custom_call.1} parent=1 // pred_check
      _
    $region3: #{tpu_custom_call.1} parent=1 // pred_check_branch
      %11 = sbr.rel (0) target = $region5
    $region4: #{tpu_custom_call.1} parent=1 // pred_region
      %13 = vsyncadd [#allocation3], 64
      %s14 = sshll.u32 %s0, 4
      %s15 = int_to_ptr.hbm [resolvable:$true] %s14
      %s16 = sshll.u32 [#allocation2], 4
      %s17 = int_to_ptr.vmem [resolvable:$true] %s16
      %22 = dma.hbm_to_vmem [thread:$0]  %s15, 64, %s17, [#allocation3], 64, 64, 4
    $region5: #{tpu_custom_call.1} parent=1 // pred_fallthru
      _
    // Predicated region
    $region6: #{tpu_custom_call.1} parent=1 // pred_check
      _
    $region7: #{tpu_custom_call.1} parent=1 // pred_check_branch
      %24 = sbr.rel (0) target = $region9
    $region8: #{tpu_custom_call.1} parent=1 // pred_region
      %26 = vsyncadd [#allocation6], 0
      %s27 = sshll.u32 %s1, 4
      %s28 = int_to_ptr.hbm [resolvable:$true] %s27
      %s29 = sshll.u32 [#allocation5], 4
      %s30 = int_to_ptr.vmem [resolvable:$true] %s29
      %35 = dma.hbm_to_vmem [thread:$0]  %s28, 2048, %s30, [#allocation6], 128, 128, 8
    $region9: #{tpu_custom_call.1} parent=1 // pred_fallthru
      _
    // Predicated region
    $region10: #{tpu_custom_call.1} parent=1 // pred_check
      _
    $region11: #{tpu_custom_call.1} parent=1 // pred_check_branch
      %37 = sbr.rel (0) target = $region13
    $region12: #{tpu_custom_call.1} parent=1 // pred_region
      %39 = dma.done [#allocation3], 128
    $region13: #{tpu_custom_call.1} parent=1 // pred_fallthru
      _
    // Predicated region
    $region14: #{tpu_custom_call.1} parent=1 // pred_check
      _
    $region15: #{tpu_custom_call.1} parent=1 // pred_check_branch
      %41 = sbr.rel (0) target = $region17
    $region16: #{tpu_custom_call.1} parent=1 // pred_region
      %43 = dma.done [#allocation6], 2048
    $region17: #{tpu_custom_call.1} parent=1 // pred_fallthru
      _
    %v44 = vld [vmem:[#allocation2] sm:$0xff]
    %v45 = vld [vmem:[#allocation5] sm:$0xff]
    %v46 = vld [vmem:[#allocation5 + $0x8] sm:$0xff]
    %v47 = vld [vmem:[#allocation5 + $0x10] sm:$0xff]
    %v48 = vld [vmem:[#allocation5 + $0x18] sm:$0xff]
    %v49 = vld [vmem:[#allocation5 + $0x20] sm:$0xff]
    %v50 = vld [vmem:[#allocation5 + $0x28] sm:$0xff]
    %v51 = vld [vmem:[#allocation5 + $0x30] sm:$0xff]
    %v52 = vld [vmem:[#allocation5 + $0x38] sm:$0xff]
    %v53 = vld [vmem:[#allocation5 + $0x40] sm:$0xff]
    %v54 = vld [vmem:[#allocation5 + $0x48] sm:$0xff]
    %v55 = vld [vmem:[#allocation5 + $0x50] sm:$0xff]
    %v56 = vld [vmem:[#allocation5 + $0x58] sm:$0xff]
    %v57 = vld [vmem:[#allocation5 + $0x60] sm:$0xff]
    %v58 = vld [vmem:[#allocation5 + $0x68] sm:$0xff]
    %v59 = vld [vmem:[#allocation5 + $0x70] sm:$0xff]
    %v60 = vld [vmem:[#allocation5 + $0x78] sm:$0xff]
    %v61 = vand.u32 %v60, 4294901760
    %62 = vmatpush.msra.mxu0 %v61
    %v63 = vand.u32 %v59, 4294901760
    %64 = vmatpush.msra.mxu0 %v63
    %v65 = vand.u32 %v58, 4294901760
    %66 = vmatpush.msra.mxu0 %v65
    %v67 = vand.u32 %v57, 4294901760
    %68 = vmatpush.msra.mxu0 %v67
    %v69 = vand.u32 %v56, 4294901760
    %70 = vmatpush.msra.mxu0 %v69
    %v71 = vand.u32 %v55, 4294901760
    %72 = vmatpush.msra.mxu0 %v71
    %v73 = vand.u32 %v54, 4294901760
    %74 = vmatpush.msra.mxu0 %v73
    %v75 = vand.u32 %v53, 4294901760
    %76 = vmatpush.msra.mxu0 %v75
    %v77 = vand.u32 %v52, 4294901760
    %78 = vmatpush.msra.mxu0 %v77
    %v79 = vand.u32 %v51, 4294901760
    %80 = vmatpush.msra.mxu0 %v79
    %v81 = vand.u32 %v50, 4294901760
    %82 = vmatpush.msra.mxu0 %v81
    %v83 = vand.u32 %v49, 4294901760
    %84 = vmatpush.msra.mxu0 %v83
    %v85 = vand.u32 %v48, 4294901760
    %86 = vmatpush.msra.mxu0 %v85
    %v87 = vand.u32 %v47, 4294901760
    %88 = vmatpush.msra.mxu0 %v87
    %v89 = vand.u32 %v46, 4294901760
    %90 = vmatpush.msra.mxu0 %v89
    %v91 = vand.u32 %v45, 4294901760
    %92 = vmatpush.msra.mxu0 %v91
    %v93 = vand.u32 %v44, 4294901760
    %v94 = vsub.f32 %v44, %v93
    %v95 = vand.u32 %v94, 4294901760
    %v96 = vsub.f32 %v94, %v95
    %v97 = vand.u32 %v96, 4294901760
    %98 = vmatmul.f32.gmra.mxu0 %v97
    %v99 = vpop.f32.mrf.mxu0
    %v100 = vadd.f32 0.0, %v99
    %101 = vdwg.mxu0
    %v102 = vand.u32 %v60, 4294901760
    %v103 = vsub.f32 %v60, %v102
    %v104 = vand.u32 %v103, 4294901760
    %v105 = vsub.f32 %v103, %v104
    %v106 = vand.u32 %v105, 4294901760
    %107 = vmatpush.msra.mxu0 %v106
    %v108 = vand.u32 %v59, 4294901760
    %v109 = vsub.f32 %v59, %v108
    %v110 = vand.u32 %v109, 4294901760
    %v111 = vsub.f32 %v109, %v110
    %v112 = vand.u32 %v111, 4294901760
    %113 = vmatpush.msra.mxu0 %v112
    %v114 = vand.u32 %v58, 4294901760
    %v115 = vsub.f32 %v58, %v114
    %v116 = vand.u32 %v115, 4294901760
    %v117 = vsub.f32 %v115, %v116
    %v118 = vand.u32 %v117, 4294901760
    %119 = vmatpush.msra.mxu0 %v118
    %v120 = vand.u32 %v57, 4294901760
    %v121 = vsub.f32 %v57, %v120
    %v122 = vand.u32 %v121, 4294901760
    %v123 = vsub.f32 %v121, %v122
    %v124 = vand.u32 %v123, 4294901760
    %125 = vmatpush.msra.mxu0 %v124
    %v126 = vand.u32 %v56, 4294901760
    %v127 = vsub.f32 %v56, %v126
    %v128 = vand.u32 %v127, 4294901760
    %v129 = vsub.f32 %v127, %v128
    %v130 = vand.u32 %v129, 4294901760
    %131 = vmatpush.msra.mxu0 %v130
    %v132 = vand.u32 %v55, 4294901760
    %v133 = vsub.f32 %v55, %v132
    %v134 = vand.u32 %v133, 4294901760
    %v135 = vsub.f32 %v133, %v134
    %v136 = vand.u32 %v135, 4294901760
    %137 = vmatpush.msra.mxu0 %v136
    %v138 = vand.u32 %v54, 4294901760
    %v139 = vsub.f32 %v54, %v138
    %v140 = vand.u32 %v139, 4294901760
    %v141 = vsub.f32 %v139, %v140
    %v142 = vand.u32 %v141, 4294901760
    %143 = vmatpush.msra.mxu0 %v142
    %v144 = vand.u32 %v53, 4294901760
    %v145 = vsub.f32 %v53, %v144
    %v146 = vand.u32 %v145, 4294901760
    %v147 = vsub.f32 %v145, %v146
    %v148 = vand.u32 %v147, 4294901760
    %149 = vmatpush.msra.mxu0 %v148
    %v150 = vand.u32 %v52, 4294901760
    %v151 = vsub.f32 %v52, %v150
    %v152 = vand.u32 %v151, 4294901760
    %v153 = vsub.f32 %v151, %v152
    %v154 = vand.u32 %v153, 4294901760
    %155 = vmatpush.msra.mxu0 %v154
    %v156 = vand.u32 %v51, 4294901760
    %v157 = vsub.f32 %v51, %v156
    %v158 = vand.u32 %v157, 4294901760
    %v159 = vsub.f32 %v157, %v158
    %v160 = vand.u32 %v159, 4294901760
    %161 = vmatpush.msra.mxu0 %v160
    %v162 = vand.u32 %v50, 4294901760
    %v163 = vsub.f32 %v50, %v162
    %v164 = vand.u32 %v163, 4294901760
    %v165 = vsub.f32 %v163, %v164
    %v166 = vand.u32 %v165, 4294901760
    %167 = vmatpush.msra.mxu0 %v166
    %v168 = vand.u32 %v49, 4294901760
    %v169 = vsub.f32 %v49, %v168
    %v170 = vand.u32 %v169, 4294901760
    %v171 = vsub.f32 %v169, %v170
    %v172 = vand.u32 %v171, 4294901760
    %173 = vmatpush.msra.mxu0 %v172
    %v174 = vand.u32 %v48, 4294901760
    %v175 = vsub.f32 %v48, %v174
    %v176 = vand.u32 %v175, 4294901760
    %v177 = vsub.f32 %v175, %v176
    %v178 = vand.u32 %v177, 4294901760
    %179 = vmatpush.msra.mxu0 %v178
    %v180 = vand.u32 %v47, 4294901760
    %v181 = vsub.f32 %v47, %v180
    %v182 = vand.u32 %v181, 4294901760
    %v183 = vsub.f32 %v181, %v182
    %v184 = vand.u32 %v183, 4294901760
    %185 = vmatpush.msra.mxu0 %v184
    %v186 = vand.u32 %v46, 4294901760
    %v187 = vsub.f32 %v46, %v186
    %v188 = vand.u32 %v187, 4294901760
    %v189 = vsub.f32 %v187, %v188
    %v190 = vand.u32 %v189, 4294901760
    %191 = vmatpush.msra.mxu0 %v190
    %v192 = vand.u32 %v45, 4294901760
    %v193 = vsub.f32 %v45, %v192
    %v194 = vand.u32 %v193, 4294901760
    %v195 = vsub.f32 %v193, %v194
    %v196 = vand.u32 %v195, 4294901760
    %197 = vmatpush.msra.mxu0 %v196
    %v198 = vand.u32 %v44, 4294901760
    %199 = vmatmul.f32.gmra.mxu0 %v198
    %v200 = vpop.f32.mrf.mxu0
    %v201 = vadd.f32 %v100, %v200
    %202 = vdwg.mxu0
    %v203 = vand.u32 %v60, 4294901760
    %v204 = vsub.f32 %v60, %v203
    %205 = vmatpush.msra.mxu0 %v204
    %v206 = vand.u32 %v59, 4294901760
    %v207 = vsub.f32 %v59, %v206
    %208 = vmatpush.msra.mxu0 %v207
    %v209 = vand.u32 %v58, 4294901760
    %v210 = vsub.f32 %v58, %v209
    %211 = vmatpush.msra.mxu0 %v210
    %v212 = vand.u32 %v57, 4294901760
    %v213 = vsub.f32 %v57, %v212
    %214 = vmatpush.msra.mxu0 %v213
    %v215 = vand.u32 %v56, 4294901760
    %v216 = vsub.f32 %v56, %v215
    %217 = vmatpush.msra.mxu0 %v216
    %v218 = vand.u32 %v55, 4294901760
    %v219 = vsub.f32 %v55, %v218
    %220 = vmatpush.msra.mxu0 %v219
    %v221 = vand.u32 %v54, 4294901760
    %v222 = vsub.f32 %v54, %v221
    %223 = vmatpush.msra.mxu0 %v222
    %v224 = vand.u32 %v53, 4294901760
    %v225 = vsub.f32 %v53, %v224
    %226 = vmatpush.msra.mxu0 %v225
    %v227 = vand.u32 %v52, 4294901760
    %v228 = vsub.f32 %v52, %v227
    %229 = vmatpush.msra.mxu0 %v228
    %v230 = vand.u32 %v51, 4294901760
    %v231 = vsub.f32 %v51, %v230
    %232 = vmatpush.msra.mxu0 %v231
    %v233 = vand.u32 %v50, 4294901760
    %v234 = vsub.f32 %v50, %v233
    %235 = vmatpush.msra.mxu0 %v234
    %v236 = vand.u32 %v49, 4294901760
    %v237 = vsub.f32 %v49, %v236
    %238 = vmatpush.msra.mxu0 %v237
    %v239 = vand.u32 %v48, 4294901760
    %v240 = vsub.f32 %v48, %v239
    %241 = vmatpush.msra.mxu0 %v240
    %v242 = vand.u32 %v47, 4294901760
    %v243 = vsub.f32 %v47, %v242
    %244 = vmatpush.msra.mxu0 %v243
    %v245 = vand.u32 %v46, 4294901760
    %v246 = vsub.f32 %v46, %v245
    %247 = vmatpush.msra.mxu0 %v246
    %v248 = vand.u32 %v45, 4294901760
    %v249 = vsub.f32 %v45, %v248
    %250 = vmatpush.msra.mxu0 %v249
    %v251 = vand.u32 %v44, 4294901760
    %v252 = vsub.f32 %v44, %v251
    %253 = vmatmul.f32.gmra.mxu0 %v252
    %v254 = vpop.f32.mrf.mxu0
    %v255 = vadd.f32 %v201, %v254
    %256 = vdwg.mxu0
    %v257 = vand.u32 %v60, 4294901760
    %258 = vmatpush.msra.mxu0 %v257
    %v259 = vand.u32 %v59, 4294901760
    %260 = vmatpush.msra.mxu0 %v259
    %v261 = vand.u32 %v58, 4294901760
    %262 = vmatpush.msra.mxu0 %v261
    %v263 = vand.u32 %v57, 4294901760
    %264 = vmatpush.msra.mxu0 %v263
    %v265 = vand.u32 %v56, 4294901760
    %266 = vmatpush.msra.mxu0 %v265
    %v267 = vand.u32 %v55, 4294901760
    %268 = vmatpush.msra.mxu0 %v267
    %v269 = vand.u32 %v54, 4294901760
    %270 = vmatpush.msra.mxu0 %v269
    %v271 = vand.u32 %v53, 4294901760
    %272 = vmatpush.msra.mxu0 %v271
    %v273 = vand.u32 %v52, 4294901760
    %274 = vmatpush.msra.mxu0 %v273
    %v275 = vand.u32 %v51, 4294901760
    %276 = vmatpush.msra.mxu0 %v275
    %v277 = vand.u32 %v50, 4294901760
    %278 = vmatpush.msra.mxu0 %v277
    %v279 = vand.u32 %v49, 4294901760
    %280 = vmatpush.msra.mxu0 %v279
    %v281 = vand.u32 %v48, 4294901760
    %282 = vmatpush.msra.mxu0 %v281
    %v283 = vand.u32 %v47, 4294901760
    %284 = vmatpush.msra.mxu0 %v283
    %v285 = vand.u32 %v46, 4294901760
    %286 = vmatpush.msra.mxu0 %v285
    %v287 = vand.u32 %v45, 4294901760
    %288 = vmatpush.msra.mxu0 %v287
    %v289 = vand.u32 %v44, 4294901760
    %v290 = vsub.f32 %v44, %v289
    %v291 = vand.u32 %v290, 4294901760
    %292 = vmatmul.f32.gmra.mxu0 %v291
    %v293 = vpop.f32.mrf.mxu0
    %v294 = vadd.f32 %v255, %v293
    %295 = vdwg.mxu0
    %v296 = vand.u32 %v60, 4294901760
    %v297 = vsub.f32 %v60, %v296
    %v298 = vand.u32 %v297, 4294901760
    %299 = vmatpush.msra.mxu0 %v298
    %v300 = vand.u32 %v59, 4294901760
    %v301 = vsub.f32 %v59, %v300
    %v302 = vand.u32 %v301, 4294901760
    %303 = vmatpush.msra.mxu0 %v302
    %v304 = vand.u32 %v58, 4294901760
    %v305 = vsub.f32 %v58, %v304
    %v306 = vand.u32 %v305, 4294901760
    %307 = vmatpush.msra.mxu0 %v306
    %v308 = vand.u32 %v57, 4294901760
    %v309 = vsub.f32 %v57, %v308
    %v310 = vand.u32 %v309, 4294901760
    %311 = vmatpush.msra.mxu0 %v310
    %v312 = vand.u32 %v56, 4294901760
    %v313 = vsub.f32 %v56, %v312
    %v314 = vand.u32 %v313, 4294901760
    %315 = vmatpush.msra.mxu0 %v314
    %v316 = vand.u32 %v55, 4294901760
    %v317 = vsub.f32 %v55, %v316
    %v318 = vand.u32 %v317, 4294901760
    %319 = vmatpush.msra.mxu0 %v318
    %v320 = vand.u32 %v54, 4294901760
    %v321 = vsub.f32 %v54, %v320
    %v322 = vand.u32 %v321, 4294901760
    %323 = vmatpush.msra.mxu0 %v322
    %v324 = vand.u32 %v53, 4294901760
    %v325 = vsub.f32 %v53, %v324
    %v326 = vand.u32 %v325, 4294901760
    %327 = vmatpush.msra.mxu0 %v326
    %v328 = vand.u32 %v52, 4294901760
    %v329 = vsub.f32 %v52, %v328
    %v330 = vand.u32 %v329, 4294901760
    %331 = vmatpush.msra.mxu0 %v330
    %v332 = vand.u32 %v51, 4294901760
    %v333 = vsub.f32 %v51, %v332
    %v334 = vand.u32 %v333, 4294901760
    %335 = vmatpush.msra.mxu0 %v334
    %v336 = vand.u32 %v50, 4294901760
    %v337 = vsub.f32 %v50, %v336
    %v338 = vand.u32 %v337, 4294901760
    %339 = vmatpush.msra.mxu0 %v338
    %v340 = vand.u32 %v49, 4294901760
    %v341 = vsub.f32 %v49, %v340
    %v342 = vand.u32 %v341, 4294901760
    %343 = vmatpush.msra.mxu0 %v342
    %v344 = vand.u32 %v48, 4294901760
    %v345 = vsub.f32 %v48, %v344
    %v346 = vand.u32 %v345, 4294901760
    %347 = vmatpush.msra.mxu0 %v346
    %v348 = vand.u32 %v47, 4294901760
    %v349 = vsub.f32 %v47, %v348
    %v350 = vand.u32 %v349, 4294901760
    %351 = vmatpush.msra.mxu0 %v350
    %v352 = vand.u32 %v46, 4294901760
    %v353 = vsub.f32 %v46, %v352
    %v354 = vand.u32 %v353, 4294901760
    %355 = vmatpush.msra.mxu0 %v354
    %v356 = vand.u32 %v45, 4294901760
    %v357 = vsub.f32 %v45, %v356
    %v358 = vand.u32 %v357, 4294901760
    %359 = vmatpush.msra.mxu0 %v358
    %v360 = vand.u32 %v44, 4294901760
    %361 = vmatmul.f32.gmra.mxu0 %v360
    %v362 = vpop.f32.mrf.mxu0
    %v363 = vadd.f32 %v294, %v362
    %364 = vdwg.mxu0
    %v365 = vand.u32 %v60, 4294901760
    %366 = vmatpush.msra.mxu0 %v365
    %v367 = vand.u32 %v59, 4294901760
    %368 = vmatpush.msra.mxu0 %v367
    %v369 = vand.u32 %v58, 4294901760
    %370 = vmatpush.msra.mxu0 %v369
    %v371 = vand.u32 %v57, 4294901760
    %372 = vmatpush.msra.mxu0 %v371
    %v373 = vand.u32 %v56, 4294901760
    %374 = vmatpush.msra.mxu0 %v373
    %v375 = vand.u32 %v55, 4294901760
    %376 = vmatpush.msra.mxu0 %v375
    %v377 = vand.u32 %v54, 4294901760
    %378 = vmatpush.msra.mxu0 %v377
    %v379 = vand.u32 %v53, 4294901760
    %380 = vmatpush.msra.mxu0 %v379
    %v381 = vand.u32 %v52, 4294901760
    %382 = vmatpush.msra.mxu0 %v381
    %v383 = vand.u32 %v51, 4294901760
    %384 = vmatpush.msra.mxu0 %v383
    %v385 = vand.u32 %v50, 4294901760
    %386 = vmatpush.msra.mxu0 %v385
    %v387 = vand.u32 %v49, 4294901760
    %388 = vmatpush.msra.mxu0 %v387
    %v389 = vand.u32 %v48, 4294901760
    %390 = vmatpush.msra.mxu0 %v389
    %v391 = vand.u32 %v47, 4294901760
    %392 = vmatpush.msra.mxu0 %v391
    %v393 = vand.u32 %v46, 4294901760
    %394 = vmatpush.msra.mxu0 %v393
    %v395 = vand.u32 %v45, 4294901760
    %396 = vmatpush.msra.mxu0 %v395
    %v397 = vand.u32 %v44, 4294901760
    %398 = vmatmul.f32.gmra.mxu0 %v397
    %v399 = vpop.f32.mrf.mxu0
    %v400 = vadd.f32 %v363, %v399
    %401 = vdwg.mxu0
    %v402 = vand.u32 2147483647, %v400
    %403 = vadd.xlane.f32.xlu0 %v402
    %v404 = vpop.xlane.xlu0 %403
    %v405 = vmax.f32 %v404, 1e-12
    %v406 = vrcp.pop %v405
    %v407 = vmul.f32 %v405, %v406
    %v408 = vsub.f32 1.0, %v407
    %v409 = vmul.f32 %v406, %v408
    %v410 = vadd.f32 %v406, %v409
    %vm411 = vweird.f32 %v405
    %vm412 = vweird.f32 %v406
    %vm413 = vmor %vm411, %vm412
    %v414 = vsel %vm413, %v406, %v410
    %v415 = vand.u32 2147483647, %v405
    %vm416 = vcmp.eq.f32.partialorder %v415, 8.507059e+37
    %v417 = vand.u32 %v405, 2147483648
    %v418 = vor.u32 1.1754944e-38, %v417
    %v419 = vsel %vm416, %v418, %v414
    %v420 = vmul.f32 1.0, %v419
    %v421 = vmul.f32 %v400, %v420
    %422 = vst [vmem:[#allocation7] sm:$0xff] %v421
    // Predicated region
    $region18: #{tpu_custom_call.1} parent=1 // pred_check
      _
    $region19: #{tpu_custom_call.1} parent=1 // pred_check_branch
      %424 = sbr.rel (0) target = $region21
    $region20: #{tpu_custom_call.1} parent=1 // pred_region
      %426 = vsyncadd [#allocation4], 64
      %s427 = sshll.u32 [#allocation7], 4
      %s428 = int_to_ptr.vmem [resolvable:$true] %s427
      %s429 = sshll.u32 %s2, 4
      %s430 = int_to_ptr.hbm [resolvable:$true] %s429
      %435 = dma.vmem_to_hbm [thread:$0]  %s428, 64, %s430, [#allocation4], 64, 64, 4
    $region21: #{tpu_custom_call.1} parent=1 // pred_fallthru
      _
    // Predicated region
    $region22: #{tpu_custom_call.1} parent=1 // pred_check
      _
    $region23: #{tpu_custom_call.1} parent=1 // pred_check_branch
      %437 = sbr.rel (0) target = $region25
    $region24: #{tpu_custom_call.1} parent=1 // pred_region
      %439 = dma.done [#allocation4], 128
    $region25: #{tpu_custom_call.1} parent=1 // pred_fallthru
      _
    %440 = vsyncpa [#allocation3], 1
    %441 = vsyncpa [#allocation6], 1
    %442 = vsyncpa [#allocation4], 1

</llo_original>
